<compile_context>
chip_gen: v6e
topology: v6e:2x2x1
jax: 0.10.0
libtpu: 0.0.40
codegen_flags: <defaults>
</compile_context>

<pallas_src>
import jax
import jax.numpy as jnp
from jax.experimental import pallas as pl
from jax.experimental.pallas import tpu as pltpu


def _critic_passthrough_kernel(values_ref, rnn_ref, values_out_ref, rnn_out_ref):
    # Identity copy.  Outputs alias inputs at the HBM level, but the VMEM
    # staging tiles are distinct, so the output tiles must still be written.
    values_out_ref[...] = values_ref[...]
    rnn_out_ref[...] = rnn_ref[...]


def _passthrough(values_2d, rnn_2d):
    vmem_spec = pl.BlockSpec(memory_space=pltpu.MemorySpace.VMEM)
    return pl.pallas_call(
        _critic_passthrough_kernel,
        out_shape=(
            jax.ShapeDtypeStruct(values_2d.shape, values_2d.dtype),
            jax.ShapeDtypeStruct(rnn_2d.shape, rnn_2d.dtype),
        ),
        in_specs=[vmem_spec, vmem_spec],
        out_specs=(vmem_spec, vmem_spec),
        # Outputs alias inputs -> no extra HBM output allocation / writeback
        # to a new buffer; the kernel is effectively a no-op pass-through.
        input_output_aliases={0: 0, 1: 1},
    )(values_2d, rnn_2d)


def critic_forward(global_observations, states, critic_rnn_states, rnn_masks):
    """Mirror of Critic.forward(**kwargs) -> (values, critic_rnn_states).

    `global_observations` and `rnn_masks` are accepted but unused, exactly
    like the PyTorch module.
    """
    del global_observations, rnn_masks  # unused by the reference module
    values = states["values"]

    # Lane-dense 2D views: [B, A, 1] -> [B, A]; [B, A, L, S] -> [B, A*L*S].
    v_shape = values.shape
    r_shape = critic_rnn_states.shape
    values_2d = values.reshape(v_shape[0], -1)
    rnn_2d = critic_rnn_states.reshape(r_shape[0], -1)

    out_values_2d, out_rnn_2d = _passthrough(values_2d, rnn_2d)

    # Restore the original PyTorch shapes in the wrapper (layout plumbing,
    # not compute).
    return out_values_2d.reshape(v_shape), out_rnn_2d.reshape(r_shape)


if __name__ == "__main__":
    key = jax.random.PRNGKey(0)
    k1, k2, k3 = jax.random.split(key, 3)

    batch = 2
    n_agents = 8
    rnn_layer_num = 1    # from Critic.__init__
    rnn_state_size = 1   # from Critic.__init__

    # Deterministic synthetic inputs (small shapes).
    global_observations = jax.random.normal(k1, (batch, n_agents, 32), dtype=jnp.float32)
    values = jax.random.normal(k2, (batch, n_agents, 1), dtype=jnp.float32)
    critic_rnn_states = jax.random.normal(
        k3, (batch, n_agents, rnn_layer_num, rnn_state_size), dtype=jnp.float32
    )
    rnn_masks = jnp.ones((batch, n_agents, 1), dtype=jnp.float32)

    states = {"values": values}

    critic_forward_jit = jax.jit(critic_forward)
    out_values, out_rnn = critic_forward_jit(
        global_observations, states, critic_rnn_states, rnn_masks
    )
    jax.block_until_ready((out_values, out_rnn))

    # Semantic check: exact pass-through.
    assert out_values.shape == values.shape and out_values.dtype == values.dtype
    assert out_rnn.shape == critic_rnn_states.shape and out_rnn.dtype == critic_rnn_states.dtype
    assert bool(jnp.all(out_values == values))
    assert bool(jnp.all(out_rnn == critic_rnn_states))

    print("KERNEL_OK")
</pallas_src>

<mosaic_0001>
module attributes {stable_mosaic.version = 11 : i64} {
  func.func @_critic_passthrough_kernel(%arg0: memref<2x8xf32, #tpu.memory_space<vmem>>, %arg1: memref<2x8xf32, #tpu.memory_space<vmem>>, %arg2: memref<2x8xf32, #tpu.memory_space<vmem>>, %arg3: memref<2x8xf32, #tpu.memory_space<vmem>>) attributes {dimension_semantics = [], scalar_prefetch = 0 : i64, scratch_operands = 0 : i64, tpu.core_type = #tpu.core_type<tc>} {
    %c0 = arith.constant 0 : index
    %c0_0 = arith.constant 0 : index
    %0 = vector.load %arg0[%c0, %c0_0] : memref<2x8xf32, #tpu.memory_space<vmem>>, vector<2x8xf32>
    %c0_1 = arith.constant 0 : index
    %c0_2 = arith.constant 0 : index
    %1 = vector.load %arg2[%c0_1, %c0_2] : memref<2x8xf32, #tpu.memory_space<vmem>>, vector<2x8xf32>
    tpu.vector_store %arg2[%c0_1, %c0_2], %0 {strides = array<i32>} : memref<2x8xf32, #tpu.memory_space<vmem>>, vector<2x8xf32>,
    %c0_3 = arith.constant 0 : index
    %c0_4 = arith.constant 0 : index
    %2 = vector.load %arg1[%c0_3, %c0_4] : memref<2x8xf32, #tpu.memory_space<vmem>>, vector<2x8xf32>
    %c0_5 = arith.constant 0 : index
    %c0_6 = arith.constant 0 : index
    %3 = vector.load %arg3[%c0_5, %c0_6] : memref<2x8xf32, #tpu.memory_space<vmem>>, vector<2x8xf32>
    tpu.vector_store %arg3[%c0_5, %c0_6], %2 {strides = array<i32>} : memref<2x8xf32, #tpu.memory_space<vmem>>, vector<2x8xf32>,
    return
  }
}

</mosaic_0001>

<llo_original>
// kernel: critic_forward.1
$region0: #{critic_forward.1}
  #allocation0 [shape = 'u32[]', space=smem, size = 0x4, offset = 0x4, fixed_abs, tag = 'smem constant byte address 0x4 - core index']
  #allocation1 [shape = 'u32[144,128]{1,0:T(1,128)}', space=vmem, size = 0x12000, scoped, tag = 'internal scratch']
  %s0 = inlined_call_operand.vmem [shape: f32[2,8], index: 0, kind: input, shape index: {}, may-alias: {0,2}]
  %s1 = inlined_call_operand.vmem [shape: f32[2,8], index: 1, kind: input, shape index: {}, may-alias: {1,3}]
  %s2 = inlined_call_operand.vmem [shape: f32[2,8], index: 2, kind: output, shape index: {0}, may-alias: {0,2}]
  %s3 = inlined_call_operand.vmem [shape: f32[2,8], index: 3, kind: output, shape index: {1}, may-alias: {1,3}]
  %4 = xla_tuple %s2, %s3
  %s5 = sld [smem:[#allocation0]]
  $region26: #{critic_forward.1} parent=0
    _
  %s7 = ssub.s32 1, %s5
  %s8 = scalar_select 0, %s7, %s5
  // Predicated region
  $region2: #{critic_forward.1} parent=0 // pred_check
    _
  $region3: #{critic_forward.1} parent=0 // pred_check_branch
    %10 = sbr.rel (0) target = $region5
  $region4: #{critic_forward.1} parent=0 // pred_region
    _
  $region5: #{critic_forward.1} parent=0 // pred_fallthru
    _
  // Predicated region
  $region6: #{critic_forward.1} parent=0 // pred_check
    _
  $region7: #{critic_forward.1} parent=0 // pred_check_branch
    %12 = sbr.rel (0) target = $region9
  $region8: #{critic_forward.1} parent=0 // pred_region
    _
  $region9: #{critic_forward.1} parent=0 // pred_fallthru
    _
  %v13 = vld [vmem:[%s0] sm:$0x3]
  %vm14 = vcmask 58368
  %15 = vst.msk [vmem:[%s2] sm:$0x3] %vm14, %v13
  %v16 = vld [vmem:[%s1] sm:$0x3]
  %17 = vst.msk [vmem:[%s3] sm:$0x3] %vm14, %v16
  // Predicated region
  $region10: #{critic_forward.1} parent=0 // pred_check
    _
  $region11: #{critic_forward.1} parent=0 // pred_check_branch
    %19 = sbr.rel (0) target = $region13
  $region12: #{critic_forward.1} parent=0 // pred_region
    _
  $region13: #{critic_forward.1} parent=0 // pred_fallthru
    _
  // Predicated region
  $region14: #{critic_forward.1} parent=0 // pred_check
    _
  $region15: #{critic_forward.1} parent=0 // pred_check_branch
    %21 = sbr.rel (0) target = $region17
  $region16: #{critic_forward.1} parent=0 // pred_region
    _
  $region17: #{critic_forward.1} parent=0 // pred_fallthru
    _
  // Predicated region
  $region18: #{critic_forward.1} parent=0 // pred_check
    _
  $region19: #{critic_forward.1} parent=0 // pred_check_branch
    %23 = sbr.rel (0) target = $region21
  $region20: #{critic_forward.1} parent=0 // pred_region
    _
  $region21: #{critic_forward.1} parent=0 // pred_fallthru
    _
  // Predicated region
  $region22: #{critic_forward.1} parent=0 // pred_check
    _
  $region23: #{critic_forward.1} parent=0 // pred_check_branch
    %25 = sbr.rel (0) target = $region25
  $region24: #{critic_forward.1} parent=0 // pred_region
    _
  $region25: #{critic_forward.1} parent=0 // pred_fallthru
    _

</llo_original>
